<compile_context>
chip_gen: v5e
topology: v5e:2x2
jax: 0.10.0
libtpu: 0.0.40
codegen_flags: <defaults>
</compile_context>

<pallas_src>
import functools
import math

import jax
import jax.numpy as jnp
from jax import lax
from jax.experimental import pallas as pl
from jax.experimental.pallas import tpu as pltpu


def _rmsnorm_kernel(x_ref, scale_ref, o_ref, *, eps):
    # x_ref:     [TM, D]  tile of rows (native dtype)
    # scale_ref: [1,  D]  VMEM-resident scale (constant index_map -> one DMA)
    # o_ref:     [TM, D]  output tile (requested / promoted dtype)
    x = x_ref[...]
    xf = x.astype(jnp.float32)                         # x.float()
    ms = jnp.mean(xf * xf, axis=-1, keepdims=True)     # mean(x**2, -1) (XLU)
    rrms = lax.rsqrt(ms + eps)                         # rsqrt(... + eps) (EUP)
    y = (xf * rrms).astype(x.dtype)                    # .to(x_dtype)
    out = y * scale_ref[...]                           # * scale (torch promotion)
    o_ref[...] = out.astype(o_ref.dtype)


def _round_up(a, m):
    return ((a + m - 1) // m) * m


def _round_down(a, m):
    return (a // m) * m


def _choose_row_tile(N, D, x_itemsize, out_itemsize, target_tile_bytes):
    """Byte-targeted row tile (multiple of 8), with >= 2 grid steps when N > 8."""
    if N <= 8:
        return N  # full-dim block (exception to the multiple-of-8 rule)
    row_bytes = D * (x_itemsize + out_itemsize)
    tm = _round_down(max(target_tile_bytes // row_bytes, 8), 8)
    tm = max(tm, 8)
    # Guarantee at least 2 grid steps: shards across the two v7x TensorCores
    # and gives the pipeline something to overlap.  No-op for large N.
    tm = min(tm, _round_up(pl.cdiv(N, 2), 8))
    # Never exceed the row count (keep sublane granularity).
    tm = min(tm, _round_down(N, 8))
    return tm


def rmsnorm_pallas(x, scale, *, eps: float = 1e-6, out_dtype=None,
                   target_tile_bytes: int = 4 * 1024 * 1024):
    """RMSNorm over the last dim of x with learned per-channel scale.

    out_dtype=None reproduces torch exactly (output dtype = promote(x, scale));
    pass out_dtype=jnp.bfloat16 to halve writeback traffic for bf16 activations.
    """
    orig_shape = x.shape
    D = orig_shape[-1]
    N = int(math.prod(orig_shape[:-1])) if len(orig_shape) > 1 else 1

    x2 = x.reshape(N, D)
    scale2 = scale.reshape(1, D)

    if out_dtype is None:
        out_dtype = jnp.promote_types(x.dtype, scale.dtype)
    out_dtype = jnp.dtype(out_dtype)

    x_item = jnp.dtype(x.dtype).itemsize
    out_item = out_dtype.itemsize
    scale_item = jnp.dtype(scale.dtype).itemsize

    tm = _choose_row_tile(N, D, x_item, out_item, target_tile_bytes)
    grid = (pl.cdiv(N, tm),)

    # VMEM budget: double-buffered in/out tiles + the f32 intermediate xf
    # + the resident scale.  Set the scoped limit with headroom, clamped so it
    # is safe on every generation (<= 48 MiB keeps clear of v7x's 64 MiB phys).
    vmem_need = (2 * tm * D * (x_item + out_item)   # pipelined input + output
                 + tm * D * 4                       # f32 intermediate
                 + 2 * D * scale_item)              # resident scale
    vmem_limit = int(min(max(32 * 1024 * 1024, int(vmem_need * 1.5)),
                         48 * 1024 * 1024))

    cost = pl.CostEstimate(
        flops=4 * N * D,           # square, row-sum, *rrms, *scale
        transcendentals=N,         # one rsqrt per row
        bytes_accessed=N * D * (x_item + out_item) + D * scale_item,
    )

    out2 = pl.pallas_call(
        functools.partial(_rmsnorm_kernel, eps=eps),
        out_shape=jax.ShapeDtypeStruct((N, D), out_dtype),
        grid=grid,
        in_specs=[
            pl.BlockSpec((tm, D), lambda i: (i, 0)),   # row tiles of x
            pl.BlockSpec((1, D), lambda i: (0, 0)),    # scale stays resident
        ],
        out_specs=pl.BlockSpec((tm, D), lambda i: (i, 0)),
        compiler_params=pltpu.CompilerParams(
            dimension_semantics=("parallel",),         # megacore on v7x
            vmem_limit_bytes=vmem_limit,
        ),
        cost_estimate=cost,
    )(x2, scale2)

    return out2.reshape(orig_shape)


def rmsnorm_ref(x, scale, eps: float = 1e-6):
    """Pure-JAX mirror of the PyTorch RMSNorm.forward."""
    xf = x.astype(jnp.float32)
    rrms = lax.rsqrt(jnp.mean(xf * xf, axis=-1, keepdims=True) + eps)
    return (xf * rrms).astype(x.dtype) * scale


if __name__ == "__main__":
    key = jax.random.PRNGKey(0)
    k_x, k_s, k_xb, k_x128, k_s128 = jax.random.split(key, 5)

    # 1) Small module-consistent shape: [batch=2, seq=16, dim=32], f32.
    D = 32
    x = jax.random.normal(k_x, (2, 16, D), jnp.float32)
    scale = 1.0 + 0.1 * jax.random.normal(k_s, (D,), jnp.float32)

    out = jax.block_until_ready(rmsnorm_pallas(x, scale))
    ref = rmsnorm_ref(x, scale)
    assert out.shape == ref.shape and out.dtype == ref.dtype
    assert jnp.allclose(out, ref, atol=1e-5, rtol=1e-5), "f32 mismatch vs reference"

    # 2) bf16 activations with f32 scale; default output promotes like torch.
    xb = jax.random.normal(k_xb, (2, 8, D), jnp.float32).astype(jnp.bfloat16)
    outb = jax.block_until_ready(rmsnorm_pallas(xb, scale))
    refb = rmsnorm_ref(xb, scale)
    assert outb.shape == refb.shape and outb.dtype == refb.dtype
    assert jnp.allclose(outb.astype(jnp.float32), refb.astype(jnp.float32),
                        atol=1e-2, rtol=1e-2), "bf16 (promoted) mismatch vs reference"

    # 3) Same, but with the optional bf16 output (traffic-saving path).
    outb16 = jax.block_until_ready(rmsnorm_pallas(xb, scale, out_dtype=jnp.bfloat16))
    assert outb16.dtype == jnp.bfloat16
    assert jnp.allclose(outb16.astype(jnp.float32), refb.astype(jnp.float32),
                        atol=2e-2, rtol=2e-2), "bf16 output mismatch vs reference"

    # 4) QKNorm-like D=128 with N not a multiple of the tile: exercises the
    #    >=2-step grid and the masked partial last block.
    D2 = 128
    x128 = jax.random.normal(k_x128, (3, 40, D2), jnp.float32)
    s128 = 1.0 + 0.1 * jax.random.normal(k_s128, (D2,), jnp.float32)
    out128 = jax.block_until_ready(rmsnorm_pallas(x128, s128))
    ref128 = rmsnorm_ref(x128, s128)
    assert out128.shape == ref128.shape and out128.dtype == ref128.dtype
    assert jnp.allclose(out128, ref128, atol=1e-5, rtol=1e-5), "D=128 mismatch vs reference"

    print("KERNEL_OK")
</pallas_src>

<mosaic_0001>
module attributes {stable_mosaic.version = 11 : i64} {
  func.func @_rmsnorm_kernel(%arg0: i32, %arg1: memref<16x32xf32, #tpu.memory_space<vmem>>, %arg2: memref<1x32xf32, #tpu.memory_space<vmem>>, %arg3: memref<16x32xf32, #tpu.memory_space<vmem>>) attributes {dimension_semantics = [#tpu.dimension_semantics<parallel>], iteration_bounds = array<i64: 2>, scalar_prefetch = 0 : i64, scratch_operands = 0 : i64, tpu.core_type = #tpu.core_type<tc>, window_params = [{transform_indices = @transform_0, window_bounds = array<i64: 16, 32>}, {pipeline_mode = #tpu.pipeline_mode<synchronous>, transform_indices = @transform_1, window_bounds = array<i64: 1, 32>}, {transform_indices = @transform_2, window_bounds = array<i64: 16, 32>}]} {
    %c0 = arith.constant 0 : index
    %c0_0 = arith.constant 0 : index
    %0 = vector.load %arg1[%c0, %c0_0] : memref<16x32xf32, #tpu.memory_space<vmem>>, vector<16x32xf32>
    %1 = arith.mulf %0, %0 : vector<16x32xf32>
    %cst = arith.constant dense<0.000000e+00> : vector<16xf32>
    %2 = vector.multi_reduction <add>, %1, %cst [1] : vector<16x32xf32> to vector<16xf32>
    %3 = vector.shape_cast %2 : vector<16xf32> to vector<16x1xf32>
    %cst_1 = arith.constant 3.200000e+01 : f32
    %4 = vector.broadcast %cst_1 : f32 to vector<16x1xf32>
    %5 = arith.divf %3, %4 : vector<16x1xf32>
    %cst_2 = arith.constant 9.99999997E-7 : f32
    %6 = vector.broadcast %cst_2 : f32 to vector<16x1xf32>
    %7 = arith.addf %5, %6 : vector<16x1xf32>
    %8 = math.rsqrt %7 : vector<16x1xf32>
    %9 = vector.broadcast %8 : vector<16x1xf32> to vector<16x32xf32>
    %10 = arith.mulf %0, %9 : vector<16x32xf32>
    %c0_3 = arith.constant 0 : index
    %c0_4 = arith.constant 0 : index
    %11 = vector.load %arg2[%c0_3, %c0_4] : memref<1x32xf32, #tpu.memory_space<vmem>>, vector<1x32xf32>
    %12 = vector.broadcast %11 : vector<1x32xf32> to vector<16x32xf32>
    %13 = arith.mulf %10, %12 : vector<16x32xf32>
    %c0_5 = arith.constant 0 : index
    %c0_6 = arith.constant 0 : index
    %14 = vector.load %arg3[%c0_5, %c0_6] : memref<16x32xf32, #tpu.memory_space<vmem>>, vector<16x32xf32>
    tpu.vector_store %arg3[%c0_5, %c0_6], %13 {strides = array<i32>} : memref<16x32xf32, #tpu.memory_space<vmem>>, vector<16x32xf32>,
    return
  }
  func.func @transform_0(%arg0: i32) -> (i32, i32) {
    %c0_i32 = arith.constant 0 : i32
    %c0_i32_0 = arith.constant 0 : i32
    return %arg0, %c0_i32 : i32, i32
  }
  func.func @transform_1(%arg0: i32) -> (i32, i32) {
    %c0_i32 = arith.constant 0 : i32
    %c0_i32_0 = arith.constant 0 : i32
    %c0_i32_1 = arith.constant 0 : i32
    return %c0_i32, %c0_i32_0 : i32, i32
  }
  func.func @transform_2(%arg0: i32) -> (i32, i32) {
    %c0_i32 = arith.constant 0 : i32
    %c0_i32_0 = arith.constant 0 : i32
    return %arg0, %c0_i32 : i32, i32
  }
}

</mosaic_0001>

<llo_original>
// kernel: tpu_custom_call.1
$region0: #{tpu_custom_call.1}
  #allocation0 [shape = 'u32[]', space=smem, size = 0x4, offset = 0x4, fixed_abs, tag = 'smem constant byte address 0x4 - core index']
  #allocation1 [shape = 'u32[72,128]{1,0:T(1,128)}', space=vmem, size = 0x9000, scoped, tag = 'internal scratch']
  %s0 = inlined_call_operand.hbm [shape: f32[32,32], index: 0, kind: input, shape index: {}]
  %s1 = inlined_call_operand.hbm [shape: f32[1,32], index: 1, kind: input, shape index: {}]
  %s2 = inlined_call_operand.hbm [shape: f32[32,32], index: 2, kind: output, shape index: {}]
  %s3 = sld [smem:[#allocation0]]
  $region49: #{tpu_custom_call.1} parent=0
    _
  %s5 = ssub.s32 1, %s3
  %s6 = scalar_select 0, %s5, %s3
  $region1: #{tpu_custom_call.1} parent=0
    #allocation2 [shape = 'u8[16384]{0}', space=vmem, size = 0x4000, scoped, tag = 'input window, operand 0']
    #allocation3 [shape = 's32[2]{0}', space=sflag, size = 0x8, scoped, tag = 'scoped memory for tpu_custom_call.1']
    #allocation4 [shape = 's32[2]{0}', space=sflag, size = 0x8, scoped, tag = 'scoped memory for tpu_custom_call.1']
    #allocation5 [shape = 'u8[512]{0}', space=vmem, size = 0x400, scoped, tag = 'input window, operand 1, single buffered']
    #allocation6 [shape = 's32[1]{0}', space=sflag, size = 0x4, scoped, tag = 'scoped memory for tpu_custom_call.1']
    #allocation7 [shape = 'u8[16384]{0}', space=vmem, size = 0x4000, scoped, tag = 'output window, operand 0']
    %7 = vsyncpa [#allocation3], 0
    %s8 = scalar_lea.sflag [#allocation3], 1
    %9 = vsyncpa %s8, 0
    %10 = vsyncpa [#allocation6], 0
    %11 = vsyncpa [#allocation4], 0
    %s12 = scalar_lea.sflag [#allocation4], 1
    %13 = vsyncpa %s12, 0
    loop: start=0, step=1, limit=4
    $region2: #{tpu_custom_call.1} parent=1 // loop_pre_header
      _
    $region3: #{tpu_custom_call.1} parent=1 // loop_header
      %s15 = sphi 0, %s19
      %p16 = scmp.ge.s32.totalorder %s15, 4
      %s25 = sphi 0, %s27
      %s28 = sphi 0, %s25
      %s29 = sphi 0, %s28
      %s45 = sphi 0, %s29
      %s49 = sphi 0, %s49
      %s51 = sphi 0, %s49
      %s52 = sphi 0, %s51
      %s66 = sphi 0, %s52
      %s72 = sphi 0, %s74
      %s75 = sphi 0, %s72
      %s76 = sphi 0, %s75
      %s92 = sphi 0, %s76
    $region4: #{tpu_custom_call.1} parent=1 // loop_header_branch
      %18 = sbr.rel (%p16) target = $region8
    $region5: #{tpu_custom_call.1} parent=1 // loop_body
      %s20 = ssub.s32 %s15, 1
      %s21 = ssub.s32 %s15, 2
      %s22 = sadd.s32 %s15, 1
      %s23 = ssub.s32 %s15, %s22
      %p24 = scmp.eq.s32.totalorder %s23, 0
      %s26 = sadd.s32 %s25, 1
      %s27 = scalar_select %p24, %s25, %s26
      %p30 = pneg %p24
      %p31 = scmp.eq.s32.totalorder %s15, 1
      %p32 = por %p30, %p31
      %p33 = scmp.ne.s32.totalorder %s25, %s28
      %p34 = scmp.eq.s32.totalorder %s15, 0
      %p35 = por %p33, %p34
      %p36 = scmp.ne.s32.totalorder %s25, %s28
      %p37 = scmp.eq.s32.totalorder %s20, 1
      %p38 = por %p36, %p37
      %p39 = scmp.ne.s32.totalorder %s28, %s29
      %p40 = scmp.eq.s32.totalorder %s20, 0
      %p41 = por %p39, %p40
      %p42 = scmp.ne.s32.totalorder %s28, %s29
      %p43 = scmp.eq.s32.totalorder %s21, 1
      %p44 = por %p42, %p43
      %p46 = scmp.ne.s32.totalorder %s29, %s45
      %p47 = scmp.eq.s32.totalorder %s21, 0
      %p48 = por %p46, %p47
      %s50 = sadd.s32 %s49, 1
      %p53 = scmp.eq.s32.totalorder %s15, 1
      %p54 = scmp.ne.s32.totalorder %s49, %s51
      %p55 = scmp.eq.s32.totalorder %s15, 0
      %p56 = por %p54, %p55
      %p57 = scmp.ne.s32.totalorder %s49, %s51
      %p58 = scmp.eq.s32.totalorder %s20, 1
      %p59 = por %p57, %p58
      %p60 = scmp.ne.s32.totalorder %s51, %s52
      %p61 = scmp.eq.s32.totalorder %s20, 0
      %p62 = por %p60, %p61
      %p63 = scmp.ne.s32.totalorder %s51, %s52
      %p64 = scmp.eq.s32.totalorder %s21, 1
      %p65 = por %p63, %p64
      %p67 = scmp.ne.s32.totalorder %s52, %s66
      %p68 = scmp.eq.s32.totalorder %s21, 0
      %p69 = por %p67, %p68
      %s70 = ssub.s32 %s15, %s22
      %p71 = scmp.eq.s32.totalorder %s70, 0
      %s73 = sadd.s32 %s72, 1
      %s74 = scalar_select %p71, %s72, %s73
      %p77 = pneg %p71
      %p78 = scmp.eq.s32.totalorder %s15, 1
      %p79 = por %p77, %p78
      %p80 = scmp.ne.s32.totalorder %s72, %s75
      %p81 = scmp.eq.s32.totalorder %s15, 0
      %p82 = por %p80, %p81
      %p83 = scmp.ne.s32.totalorder %s72, %s75
      %p84 = scmp.eq.s32.totalorder %s20, 1
      %p85 = por %p83, %p84
      %p86 = scmp.ne.s32.totalorder %s75, %s76
      %p87 = scmp.eq.s32.totalorder %s20, 0
      %p88 = por %p86, %p87
      %p89 = scmp.ne.s32.totalorder %s75, %s76
      %p90 = scmp.eq.s32.totalorder %s21, 1
      %p91 = por %p89, %p90
      %p93 = scmp.ne.s32.totalorder %s76, %s92
      %p94 = scmp.eq.s32.totalorder %s21, 0
      %p95 = por %p93, %p94
      %p96 = scmp.le.s32.totalorder 1, %s15
      %p97 = scmp.lt.s32.totalorder %s15, 3
      %p98 = pnand %p96, %p97
      %p99 = pneg %p98
      // Predicated region
      $region9: #{tpu_custom_call.1} parent=5 // pred_check
        _
      $region10: #{tpu_custom_call.1} parent=5 // pred_check_branch
        %101 = sbr.rel (%p98) target = $region12
      $region11: #{tpu_custom_call.1} parent=5 // pred_region
        %s102 = ssub.s32 %s15, 1
        // Predicated region
        $region13: #{tpu_custom_call.1} parent=11 // pred_check
          %p103 = pneg %p62
        $region14: #{tpu_custom_call.1} parent=11 // pred_check_branch
          %105 = sbr.rel (%p103) target = $region16
        $region15: #{tpu_custom_call.1} parent=11 // pred_region
          %107 = vsyncadd [#allocation6], 0
          %s109 = sshll.u32 %s1, 4
          %s110 = int_to_ptr.hbm [resolvable:$true] %s109
          %s111 = sshll.u32 [#allocation5], 4
          %s112 = int_to_ptr.vmem [resolvable:$true] %s111
          %114 = dma.hbm_to_vmem [thread:$0]  %s110, 16, %s112, [#allocation6]
        $region16: #{tpu_custom_call.1} parent=11 // pred_fallthru
          _
      $region12: #{tpu_custom_call.1} parent=5 // pred_fallthru
        _
      %p115 = scmp.lt.s32.totalorder %s15, 2
      // Predicated region
      $region17: #{tpu_custom_call.1} parent=5 // pred_check
        %p116 = pneg %p115
      $region18: #{tpu_custom_call.1} parent=5 // pred_check_branch
        %118 = sbr.rel (%p116) target = $region20
      $region19: #{tpu_custom_call.1} parent=5 // pred_region
        // Predicated region
        $region21: #{tpu_custom_call.1} parent=19 // pred_check
          %p119 = pneg %p35
        $region22: #{tpu_custom_call.1} parent=19 // pred_check_branch
          %121 = sbr.rel (%p119) target = $region24
        $region23: #{tpu_custom_call.1} parent=19 // pred_region
          %s122 = sand.u32 %s25, 1
          %s123 = scalar_lea.sflag [#allocation3], %s122
          %s124 = sand.u32 %s25, 1
          %s125 = smul.addr %s124, 16
          %s126 = scalar_lea.vmem [#allocation2], %s125
          %s127 = smul.u32 2, %s15
          %129 = vsyncadd %s123, 0
          %s130 = smul.addr %s127, 8
          %s131 = scalar_lea.hbm %s0, %s130
          %s132 = sshll.u32 %s131, 4
          %s133 = int_to_ptr.hbm [resolvable:$true] %s132
          %s134 = sshll.u32 %s126, 4
          %s135 = int_to_ptr.vmem [resolvable:$true] %s134
          %140 = dma.hbm_to_vmem [thread:$0]  %s133, 256, %s135, %s123, 128, 128, 8
        $region24: #{tpu_custom_call.1} parent=19 // pred_fallthru
          _
      $region20: #{tpu_custom_call.1} parent=5 // pred_fallthru
        _
      %p141 = scmp.le.s32.totalorder 1, %s15
      %p142 = scmp.lt.s32.totalorder %s15, 3
      %p143 = pnand %p141, %p142
      %p144 = pneg %p143
      // Predicated region
      $region25: #{tpu_custom_call.1} parent=5 // pred_check
        _
      $region26: #{tpu_custom_call.1} parent=5 // pred_check_branch
        %146 = sbr.rel (%p143) target = $region28
      $region27: #{tpu_custom_call.1} parent=5 // pred_region
        %s147 = ssub.s32 %s15, 1
        %s148 = sand.u32 %s28, 1
        %s149 = scalar_lea.sflag [#allocation3], %s148
        %s150 = sand.u32 %s28, 1
        %s151 = smul.addr %s150, 16
        %s152 = scalar_lea.vmem [#allocation2], %s151
        // Predicated region
        $region29: #{tpu_custom_call.1} parent=27 // pred_check
          %p153 = pneg %p41
        $region30: #{tpu_custom_call.1} parent=27 // pred_check_branch
          %155 = sbr.rel (%p153) target = $region32
        $region31: #{tpu_custom_call.1} parent=27 // pred_region
          %157 = dma.done %s149, 256
        $region32: #{tpu_custom_call.1} parent=27 // pred_fallthru
          _
        // Predicated region
        $region33: #{tpu_custom_call.1} parent=27 // pred_check
          %p158 = pneg %p62
        $region34: #{tpu_custom_call.1} parent=27 // pred_check_branch
          %160 = sbr.rel (%p158) target = $region36
        $region35: #{tpu_custom_call.1} parent=27 // pred_region
          %162 = dma.done [#allocation6], 16
        $region36: #{tpu_custom_call.1} parent=27 // pred_fallthru
          _
        %s163 = sand.u32 %s28, 1
        %s164 = scalar_lea.sflag [#allocation3], %s163
        %s165 = sand.u32 %s28, 1
        %s166 = smul.addr %s165, 16
        %s167 = scalar_lea.vmem [#allocation2], %s166
        %p168 = pneg %p41
        %p169 = pneg %p38
        %p170 = pneg %p62
        %p171 = pneg %p59
        %p172 = pneg %p88
        %p173 = pneg %p85
        %s174 = sand.u32 %s75, 1
        %s175 = scalar_lea.sflag [#allocation4], %s174
        %s176 = sand.u32 %s75, 1
        %s177 = smul.addr %s176, 16
        %s178 = scalar_lea.vmem [#allocation7], %s177
        %s179 = smul.u32 2, %s20
        %s180 = smul.u32 2, %s20
        %v181 = vld [vmem:[%s152] sm:$0xff]
        %v182 = vld [vmem:[%s152 + $0x8] sm:$0xff]
        %v183 = vmul.f32 %v181, %v181
        %v184 = vmul.f32 %v182, %v182
        %vm185 = vcmask 261120
        %v186 = vsel %vm185, %v183, 0.0
        %187 = vadd.xlane.f32.xlu0 %v186
        %v188 = vpop.xlane.xlu0 %187
        %v189 = vsel %vm185, %v184, 0.0
        %190 = vadd.xlane.f32.xlu0 %v189
        %v191 = vpop.xlane.xlu0 %190
        %v192 = vrcp.pop 32.0
        %v193 = vmul.f32 32.0, %v192
        %v194 = vsub.f32 1.0, %v193
        %v195 = vmul.f32 %v192, %v194
        %v196 = vadd.f32 %v192, %v195
        %vm197 = vweird.f32 %v192
        %v198 = vsel %vm197, %v192, %v196
        %v199 = vmul.f32 %v188, %v198
        %v200 = vmul.f32 %v191, %v198
        %v201 = vadd.f32 %v199, 1e-06
        %v202 = vadd.f32 %v200, 1e-06
        %v203 = vrsqrt.pop %v201
        %v204 = vmul.f32 %v203, %v201
        %v205 = vmul.f32 %v204, %v203
        %v206 = vmul.f32 0.5, %v205
        %v207 = vsub.f32 1.5, %v206
        %v208 = vmul.f32 %v203, %v207
        %vm209 = vweird.f32 %v201
        %vm210 = vweird.f32 %v203
        %vm211 = vmor %vm209, %vm210
        %v212 = vsel %vm211, %v203, %v208
        %v213 = vrsqrt.pop %v202
        %v214 = vmul.f32 %v213, %v202
        %v215 = vmul.f32 %v214, %v213
        %v216 = vmul.f32 0.5, %v215
        %v217 = vsub.f32 1.5, %v216
        %v218 = vmul.f32 %v213, %v217
        %vm219 = vweird.f32 %v202
        %vm220 = vweird.f32 %v213
        %vm221 = vmor %vm219, %vm220
        %v222 = vsel %vm221, %v213, %v218
        %v223 = vmul.f32 %v181, %v212
        %v224 = vmul.f32 %v182, %v222
        %v225 = vld [vmem:[#allocation5] sm:$0x1]
        %v227 = vperm.slane %v225, 0
        %v229 = vmul.f32 %v223, %v227
        %v230 = vmul.f32 %v224, %v227
        %231 = vst.msk [vmem:[%s178] sm:$0xff] %vm185, %v229
        %232 = vst.msk [vmem:[%s178 + $0x8] sm:$0xff] %vm185, %v230
        %s233 = sand.u32 %s75, 1
        %s234 = scalar_lea.sflag [#allocation4], %s233
        %s235 = sand.u32 %s75, 1
        %s236 = smul.addr %s235, 16
        %s237 = scalar_lea.vmem [#allocation7], %s236
        // Predicated region
        $region37: #{tpu_custom_call.1} parent=27 // pred_check
          %p238 = pneg %p85
        $region38: #{tpu_custom_call.1} parent=27 // pred_check_branch
          %240 = sbr.rel (%p238) target = $region40
        $region39: #{tpu_custom_call.1} parent=27 // pred_region
          %s241 = smul.u32 2, %s20
          %243 = vsyncadd %s234, 0
          %s244 = smul.addr %s241, 8
          %s245 = scalar_lea.hbm %s2, %s244
          %s246 = sshll.u32 %s237, 4
          %s247 = int_to_ptr.vmem [resolvable:$true] %s246
          %s248 = sshll.u32 %s245, 4
          %s249 = int_to_ptr.hbm [resolvable:$true] %s248
          %254 = dma.vmem_to_hbm [thread:$0]  %s247, 256, %s249, %s234, 128, 128, 8
        $region40: #{tpu_custom_call.1} parent=27 // pred_fallthru
          _
      $region28: #{tpu_custom_call.1} parent=5 // pred_fallthru
        _
      %p255 = scmp.le.s32.totalorder 2, %s15
      // Predicated region
      $region41: #{tpu_custom_call.1} parent=5 // pred_check
        %p256 = pneg %p255
      $region42: #{tpu_custom_call.1} parent=5 // pred_check_branch
        %258 = sbr.rel (%p256) target = $region44
      $region43: #{tpu_custom_call.1} parent=5 // pred_region
        %s259 = ssub.s32 %s15, 2
        // Predicated region
        $region45: #{tpu_custom_call.1} parent=43 // pred_check
          %p260 = pneg %p91
        $region46: #{tpu_custom_call.1} parent=43 // pred_check_branch
          %262 = sbr.rel (%p260) target = $region48
        $region47: #{tpu_custom_call.1} parent=43 // pred_region
          %s263 = sand.u32 %s76, 1
          %s264 = scalar_lea.sflag [#allocation4], %s263
          %s265 = sand.u32 %s76, 1
          %s266 = smul.addr %s265, 16
          %s267 = scalar_lea.vmem [#allocation7], %s266
          %269 = dma.done %s264, 256
        $region48: #{tpu_custom_call.1} parent=43 // pred_fallthru
          _
      $region44: #{tpu_custom_call.1} parent=5 // pred_fallthru
        _
    $region6: #{tpu_custom_call.1} parent=1 // loop_footer
      %s19 = sadd.s32 1, %s15
    $region7: #{tpu_custom_call.1} parent=1 // loop_footer_branch
      %14 = sbr.rel target = $region3
    $region8: #{tpu_custom_call.1} parent=1 // loop_exit
      _
    %270 = vsyncpa [#allocation3], 1
    %s271 = scalar_lea.sflag [#allocation3], 1
    %272 = vsyncpa %s271, 1
    %273 = vsyncpa [#allocation6], 1
    %274 = vsyncpa [#allocation4], 1
    %s275 = scalar_lea.sflag [#allocation4], 1
    %276 = vsyncpa %s275, 1

</llo_original>
